<compile_context>
chip_gen: v5e
topology: v5e:2x2
jax: 0.10.0
libtpu: 0.0.40
codegen_flags: <defaults>
</compile_context>

<pallas_src>
import functools

import jax
import jax.numpy as jnp
from jax import lax
from jax.experimental import pallas as pl
from jax.experimental.pallas import tpu as pltpu


def bert_output_kernel(h_ref, res_ref, w_ref, b_ref, g_ref, beta_ref, o_ref,
                       *, eps):
    # Hoist parameter loads / f32 casts (once per tile; broadcast below).
    b32 = b_ref[...].astype(jnp.float32)        # (1, H)
    g32 = g_ref[...].astype(jnp.float32)        # (1, H)
    beta32 = beta_ref[...].astype(jnp.float32)  # (1, H)

    # Dense: x @ W on the MXU (bf16 operands, f32 accumulation).
    acc = jnp.dot(h_ref[...], w_ref[...], preferred_element_type=jnp.float32)

    # TODO(synk): dropout omitted (inference / eval mode -> identity).

    # Bias fused into the residual add (one VALU pass over the (tm, H) tile).
    x = acc + (res_ref[...].astype(jnp.float32) + b32)

    # LayerNorm over the hidden (lane) axis.  The mean/var reductions ride the
    # XLU slot and rsqrt the EUP slot, off the MXU/VALU critical path.
    mean = jnp.mean(x, axis=-1, keepdims=True)
    centered = x - mean
    var = jnp.mean(centered * centered, axis=-1, keepdims=True)
    inv = lax.rsqrt(var + eps)
    y = centered * inv * g32 + beta32

    o_ref[...] = y.astype(o_ref.dtype)


def _pick_tm(T, tm_target):
    """MXU-aligned row tile; prefer >= 2 grid steps so megacore (v7x) balances."""
    tm = min(tm_target, T)
    if tm < T:
        tm = max(8, (tm // 8) * 8)          # keep sublane (8) alignment
    if T // tm < 2 and T >= 16 and (T // 2) % 8 == 0:
        tm = T // 2                         # avoid a length-1 grid when possible
    return tm


def _vmem_limit_bytes(tm, I, H, act_bytes, out_bytes, w_bytes):
    weight = 2 * I * H * w_bytes            # conservative: count a double buffer
    h_tiles = 2 * tm * I * act_bytes
    r_tiles = 2 * tm * H * act_bytes
    o_tiles = 2 * tm * H * out_bytes
    params = 3 * 2 * H * 4
    est = weight + h_tiles + r_tiles + o_tiles + params
    # 1.5x + 8 MiB headroom for f32 LN intermediates / compiler scratch.
    return int(min(max(1.5 * est + (8 << 20), 32 << 20), 128 << 20))


def bert_output(hidden_states, input_tensor, weight, bias, gamma, beta,
                *, eps=1e-12, tm_target=256, single_buffer_weight=True):
    """hidden_states: [T, I], input_tensor: [T, H],
       weight: [I, H] (transposed vs PyTorch nn.Linear), bias/gamma/beta: [H].

    tm_target: row tile; 256 matches the v6e/v7x MXU edge, use 128 on v5e.
    """
    T, I = hidden_states.shape
    H = input_tensor.shape[-1]

    tm = _pick_tm(T, tm_target)
    grid = (pl.cdiv(T, tm),)

    bias2 = bias.reshape(1, H)
    gamma2 = gamma.reshape(1, H)
    beta2 = beta.reshape(1, H)

    # The dense weight block is constant across the grid; single-buffer it to
    # reclaim I*H*dtype bytes of VMEM (matters under v7x's 64 MiB VMEM).
    if single_buffer_weight:
        w_spec = pl.BlockSpec((I, H), lambda i: (0, 0),
                              pipeline_mode=pl.Buffered(1))
    else:
        w_spec = pl.BlockSpec((I, H), lambda i: (0, 0))

    vmem_limit = _vmem_limit_bytes(
        tm, I, H,
        act_bytes=hidden_states.dtype.itemsize,
        out_bytes=hidden_states.dtype.itemsize,
        w_bytes=weight.dtype.itemsize)

    kernel = functools.partial(bert_output_kernel, eps=eps)

    return pl.pallas_call(
        kernel,
        out_shape=jax.ShapeDtypeStruct((T, H), hidden_states.dtype),
        grid_spec=pltpu.PrefetchScalarGridSpec(
            num_scalar_prefetch=0,
            grid=grid,
            in_specs=[
                pl.BlockSpec((tm, I), lambda i: (i, 0)),   # activations tile
                pl.BlockSpec((tm, H), lambda i: (i, 0)),   # residual tile
                w_spec,                                    # dense weight (resident)
                pl.BlockSpec((1, H), lambda i: (0, 0)),    # dense bias
                pl.BlockSpec((1, H), lambda i: (0, 0)),    # LN gamma
                pl.BlockSpec((1, H), lambda i: (0, 0)),    # LN beta
            ],
            out_specs=pl.BlockSpec((tm, H), lambda i: (i, 0)),
        ),
        compiler_params=pltpu.CompilerParams(
            dimension_semantics=("parallel",),
            vmem_limit_bytes=vmem_limit),
    )(hidden_states, input_tensor, weight, bias2, gamma2, beta2)


def bert_output_ref(hidden_states, input_tensor, weight, bias, gamma, beta,
                    eps=1e-12):
    x = jnp.dot(hidden_states, weight, preferred_element_type=jnp.float32)
    x = x + bias.astype(jnp.float32) + input_tensor.astype(jnp.float32)
    mean = jnp.mean(x, axis=-1, keepdims=True)
    var = jnp.mean((x - mean) ** 2, axis=-1, keepdims=True)
    y = (x - mean) * lax.rsqrt(var + eps)
    return y * gamma.astype(jnp.float32) + beta.astype(jnp.float32)


if __name__ == "__main__":
    # Small config consistent with BertOutput.__init__ (lane-aligned dims so no
    # masked partial stores).
    config = dict(intermediate_size=256, hidden_size=128,
                  layer_norm_eps=1e-12, hidden_dropout_prob=0.1)
    B, S = 2, 8
    I, H = config["intermediate_size"], config["hidden_size"]

    key = jax.random.PRNGKey(0)
    k1, k2, k3, k4, k5, k6 = jax.random.split(key, 6)

    # bf16 activations / weight feed the MXU at full rate; small params stay f32.
    hidden_states = jax.random.normal(
        k1, (B, S, I), dtype=jnp.float32).astype(jnp.bfloat16)
    input_tensor = jax.random.normal(
        k2, (B, S, H), dtype=jnp.float32).astype(jnp.bfloat16)

    # PyTorch Linear weight is [H, I]; we store its transpose [I, H].
    w_t = (jax.random.normal(k3, (I, H), dtype=jnp.float32)
           * (1.0 / jnp.sqrt(I))).astype(jnp.bfloat16)
    b = jax.random.normal(k4, (H,), dtype=jnp.float32) * 0.02
    gamma = (jnp.ones((H,), dtype=jnp.float32)
             + 0.01 * jax.random.normal(k5, (H,), dtype=jnp.float32))
    beta = 0.01 * jax.random.normal(k6, (H,), dtype=jnp.float32)

    h_flat = hidden_states.reshape(B * S, I)
    r_flat = input_tensor.reshape(B * S, H)

    try:
        out = bert_output(h_flat, r_flat, w_t, b, gamma, beta,
                          eps=config["layer_norm_eps"])
        out = jax.block_until_ready(out)
    except Exception:
        # TODO(synk): pl.Buffered(1) single-buffering unsupported on this jax
        # build; fall back to the default double-buffered weight block.
        out = bert_output(h_flat, r_flat, w_t, b, gamma, beta,
                          eps=config["layer_norm_eps"],
                          single_buffer_weight=False)
        out = jax.block_until_ready(out)

    ref = bert_output_ref(h_flat, r_flat, w_t, b, gamma, beta,
                          eps=config["layer_norm_eps"])

    out3 = out.reshape(B, S, H).astype(jnp.float32)
    ref3 = ref.reshape(B, S, H)
    assert jnp.allclose(out3, ref3, atol=2e-2, rtol=2e-2), "mismatch vs reference"

    print("KERNEL_OK")
</pallas_src>

<mosaic_0001>
module attributes {stable_mosaic.version = 11 : i64} {
  func.func @bert_output_kernel(%arg0: i32, %arg1: memref<8x256xbf16, #tpu.memory_space<vmem>>, %arg2: memref<8x128xbf16, #tpu.memory_space<vmem>>, %arg3: memref<256x128xbf16, #tpu.memory_space<vmem>>, %arg4: memref<1x128xf32, #tpu.memory_space<vmem>>, %arg5: memref<1x128xf32, #tpu.memory_space<vmem>>, %arg6: memref<1x128xf32, #tpu.memory_space<vmem>>, %arg7: memref<8x128xbf16, #tpu.memory_space<vmem>>) attributes {dimension_semantics = [#tpu.dimension_semantics<parallel>], iteration_bounds = array<i64: 2>, scalar_prefetch = 0 : i64, scratch_operands = 0 : i64, tpu.core_type = #tpu.core_type<tc>, window_params = [{transform_indices = @transform_0, window_bounds = array<i64: 8, 256>}, {transform_indices = @transform_1, window_bounds = array<i64: 8, 128>}, {pipeline_mode = #tpu.pipeline_mode<synchronous>, transform_indices = @transform_2, window_bounds = array<i64: 256, 128>}, {pipeline_mode = #tpu.pipeline_mode<synchronous>, transform_indices = @transform_3, window_bounds = array<i64: 1, 128>}, {pipeline_mode = #tpu.pipeline_mode<synchronous>, transform_indices = @transform_4, window_bounds = array<i64: 1, 128>}, {pipeline_mode = #tpu.pipeline_mode<synchronous>, transform_indices = @transform_5, window_bounds = array<i64: 1, 128>}, {transform_indices = @transform_6, window_bounds = array<i64: 8, 128>}]} {
    %c0 = arith.constant 0 : index
    %c0_0 = arith.constant 0 : index
    %0 = vector.load %arg4[%c0, %c0_0] : memref<1x128xf32, #tpu.memory_space<vmem>>, vector<1x128xf32>
    %c0_1 = arith.constant 0 : index
    %c0_2 = arith.constant 0 : index
    %1 = vector.load %arg5[%c0_1, %c0_2] : memref<1x128xf32, #tpu.memory_space<vmem>>, vector<1x128xf32>
    %c0_3 = arith.constant 0 : index
    %c0_4 = arith.constant 0 : index
    %2 = vector.load %arg6[%c0_3, %c0_4] : memref<1x128xf32, #tpu.memory_space<vmem>>, vector<1x128xf32>
    %c0_5 = arith.constant 0 : index
    %c0_6 = arith.constant 0 : index
    %3 = vector.load %arg1[%c0_5, %c0_6] : memref<8x256xbf16, #tpu.memory_space<vmem>>, vector<8x256xbf16>
    %c0_7 = arith.constant 0 : index
    %c0_8 = arith.constant 0 : index
    %4 = vector.load %arg3[%c0_7, %c0_8] : memref<256x128xbf16, #tpu.memory_space<vmem>>, vector<256x128xbf16>
    %cst = arith.constant dense<0.000000e+00> : vector<8x128xf32>
    %5 = tpu.matmul %3, %4, %cst {dimension_numbers = #tpu.dot_dimension_numbers<[1], [0], [0], [1], [0, 0, 1, 1], [], []>} : vector<8x256xbf16>, vector<256x128xbf16>, vector<8x128xf32> -> vector<8x128xf32>
    %c0_9 = arith.constant 0 : index
    %c0_10 = arith.constant 0 : index
    %6 = vector.load %arg2[%c0_9, %c0_10] : memref<8x128xbf16, #tpu.memory_space<vmem>>, vector<8x128xbf16>
    %7 = arith.extf %6 : vector<8x128xbf16> to vector<8x128xf32>
    %8 = vector.broadcast %0 : vector<1x128xf32> to vector<8x128xf32>
    %9 = arith.addf %7, %8 : vector<8x128xf32>
    %10 = arith.addf %5, %9 : vector<8x128xf32>
    %cst_11 = arith.constant dense<0.000000e+00> : vector<8xf32>
    %11 = vector.multi_reduction <add>, %10, %cst_11 [1] : vector<8x128xf32> to vector<8xf32>
    %12 = vector.shape_cast %11 : vector<8xf32> to vector<8x1xf32>
    %cst_12 = arith.constant 1.280000e+02 : f32
    %13 = vector.broadcast %cst_12 : f32 to vector<8x1xf32>
    %14 = arith.divf %12, %13 : vector<8x1xf32>
    %15 = vector.broadcast %14 : vector<8x1xf32> to vector<8x128xf32>
    %16 = arith.subf %10, %15 : vector<8x128xf32>
    %17 = arith.mulf %16, %16 : vector<8x128xf32>
    %cst_13 = arith.constant dense<0.000000e+00> : vector<8xf32>
    %18 = vector.multi_reduction <add>, %17, %cst_13 [1] : vector<8x128xf32> to vector<8xf32>
    %19 = vector.shape_cast %18 : vector<8xf32> to vector<8x1xf32>
    %cst_14 = arith.constant 1.280000e+02 : f32
    %20 = vector.broadcast %cst_14 : f32 to vector<8x1xf32>
    %21 = arith.divf %19, %20 : vector<8x1xf32>
    %cst_15 = arith.constant 9.99999996E-13 : f32
    %22 = vector.broadcast %cst_15 : f32 to vector<8x1xf32>
    %23 = arith.addf %21, %22 : vector<8x1xf32>
    %24 = math.rsqrt %23 : vector<8x1xf32>
    %25 = vector.broadcast %24 : vector<8x1xf32> to vector<8x128xf32>
    %26 = arith.mulf %16, %25 : vector<8x128xf32>
    %27 = vector.broadcast %1 : vector<1x128xf32> to vector<8x128xf32>
    %28 = arith.mulf %26, %27 : vector<8x128xf32>
    %29 = vector.broadcast %2 : vector<1x128xf32> to vector<8x128xf32>
    %30 = arith.addf %28, %29 : vector<8x128xf32>
    %31 = arith.truncf %30 : vector<8x128xf32> to vector<8x128xbf16>
    %c0_16 = arith.constant 0 : index
    %c0_17 = arith.constant 0 : index
    %32 = vector.load %arg7[%c0_16, %c0_17] : memref<8x128xbf16, #tpu.memory_space<vmem>>, vector<8x128xbf16>
    tpu.vector_store %arg7[%c0_16, %c0_17], %31 {strides = array<i32>} : memref<8x128xbf16, #tpu.memory_space<vmem>>, vector<8x128xbf16>,
    return
  }
  func.func @transform_0(%arg0: i32) -> (i32, i32) {
    %c0_i32 = arith.constant 0 : i32
    %c0_i32_0 = arith.constant 0 : i32
    return %arg0, %c0_i32 : i32, i32
  }
  func.func @transform_1(%arg0: i32) -> (i32, i32) {
    %c0_i32 = arith.constant 0 : i32
    %c0_i32_0 = arith.constant 0 : i32
    return %arg0, %c0_i32 : i32, i32
  }
  func.func @transform_2(%arg0: i32) -> (i32, i32) {
    %c0_i32 = arith.constant 0 : i32
    %c0_i32_0 = arith.constant 0 : i32
    %c0_i32_1 = arith.constant 0 : i32
    return %c0_i32, %c0_i32_0 : i32, i32
  }
  func.func @transform_3(%arg0: i32) -> (i32, i32) {
    %c0_i32 = arith.constant 0 : i32
    %c0_i32_0 = arith.constant 0 : i32
    %c0_i32_1 = arith.constant 0 : i32
    return %c0_i32, %c0_i32_0 : i32, i32
  }
  func.func @transform_4(%arg0: i32) -> (i32, i32) {
    %c0_i32 = arith.constant 0 : i32
    %c0_i32_0 = arith.constant 0 : i32
    %c0_i32_1 = arith.constant 0 : i32
    return %c0_i32, %c0_i32_0 : i32, i32
  }
  func.func @transform_5(%arg0: i32) -> (i32, i32) {
    %c0_i32 = arith.constant 0 : i32
    %c0_i32_0 = arith.constant 0 : i32
    %c0_i32_1 = arith.constant 0 : i32
    return %c0_i32, %c0_i32_0 : i32, i32
  }
  func.func @transform_6(%arg0: i32) -> (i32, i32) {
    %c0_i32 = arith.constant 0 : i32
    %c0_i32_0 = arith.constant 0 : i32
    return %arg0, %c0_i32 : i32, i32
  }
}

module attributes {stable_mosaic.version = 11 : i64} {
  func.func @bert_output_kernel(%arg0: i32, %arg1: memref<8x256xbf16, #tpu.memory_space<vmem>>, %arg2: memref<8x128xbf16, #tpu.memory_space<vmem>>, %arg3: memref<256x128xbf16, #tpu.memory_space<vmem>>, %arg4: memref<1x128xf32, #tpu.memory_space<vmem>>, %arg5: memref<1x128xf32, #tpu.memory_space<vmem>>, %arg6: memref<1x128xf32, #tpu.memory_space<vmem>>, %arg7: memref<8x128xbf16, #tpu.memory_space<vmem>>) attributes {dimension_semantics = [#tpu.dimension_semantics<parallel>], iteration_bounds = array<i64: 2>, scalar_prefetch = 0 : i64, scratch_operands = 0 : i64, tpu.core_type = #tpu.core_type<tc>, window_params = [{transform_indices = @transform_0, window_bounds = array<i64: 8, 256>}, {transform_indices = @transform_1, window_bounds = array<i64: 8, 128>}, {pipeline_mode = #tpu.pipeline_mode<synchronous>, transform_indices = @transform_2, window_bounds = array<i64: 256, 128>}, {pipeline_mode = #tpu.pipeline_mode<synchronous>, transform_indices = @transform_3, window_bounds = array<i64: 1, 128>}, {pipeline_mode = #tpu.pipeline_mode<synchronous>, transform_indices = @transform_4, window_bounds = array<i64: 1, 128>}, {pipeline_mode = #tpu.pipeline_mode<synchronous>, transform_indices = @transform_5, window_bounds = array<i64: 1, 128>}, {transform_indices = @transform_6, window_bounds = array<i64: 8, 128>}]} {
    %c0 = arith.constant 0 : index
    %c0_0 = arith.constant 0 : index
    %0 = vector.load %arg4[%c0, %c0_0] : memref<1x128xf32, #tpu.memory_space<vmem>>, vector<1x128xf32>
    %c0_1 = arith.constant 0 : index
    %c0_2 = arith.constant 0 : index
    %1 = vector.load %arg5[%c0_1, %c0_2] : memref<1x128xf32, #tpu.memory_space<vmem>>, vector<1x128xf32>
    %c0_3 = arith.constant 0 : index
    %c0_4 = arith.constant 0 : index
    %2 = vector.load %arg6[%c0_3, %c0_4] : memref<1x128xf32, #tpu.memory_space<vmem>>, vector<1x128xf32>
    %c0_5 = arith.constant 0 : index
    %c0_6 = arith.constant 0 : index
    %3 = vector.load %arg1[%c0_5, %c0_6] : memref<8x256xbf16, #tpu.memory_space<vmem>>, vector<8x256xbf16>
    %c0_7 = arith.constant 0 : index
    %c0_8 = arith.constant 0 : index
    %4 = vector.load %arg3[%c0_7, %c0_8] : memref<256x128xbf16, #tpu.memory_space<vmem>>, vector<256x128xbf16>
    %cst = arith.constant dense<0.000000e+00> : vector<8x128xf32>
    %5 = tpu.matmul %3, %4, %cst {dimension_numbers = #tpu.dot_dimension_numbers<[1], [0], [0], [1], [0, 0, 1, 1], [], []>} : vector<8x256xbf16>, vector<256x128xbf16>, vector<8x128xf32> -> vector<8x128xf32>
    %c0_9 = arith.constant 0 : index
    %c0_10 = arith.constant 0 : index
    %6 = vector.load %arg2[%c0_9, %c0_10] : memref<8x128xbf16, #tpu.memory_space<vmem>>, vector<8x128xbf16>
    %7 = arith.extf %6 : vector<8x128xbf16> to vector<8x128xf32>
    %8 = vector.broadcast %0 : vector<1x128xf32> to vector<8x128xf32>
    %9 = arith.addf %7, %8 : vector<8x128xf32>
    %10 = arith.addf %5, %9 : vector<8x128xf32>
    %cst_11 = arith.constant dense<0.000000e+00> : vector<8xf32>
    %11 = vector.multi_reduction <add>, %10, %cst_11 [1] : vector<8x128xf32> to vector<8xf32>
    %12 = vector.shape_cast %11 : vector<8xf32> to vector<8x1xf32>
    %cst_12 = arith.constant 1.280000e+02 : f32
    %13 = vector.broadcast %cst_12 : f32 to vector<8x1xf32>
    %14 = arith.divf %12, %13 : vector<8x1xf32>
    %15 = vector.broadcast %14 : vector<8x1xf32> to vector<8x128xf32>
    %16 = arith.subf %10, %15 : vector<8x128xf32>
    %17 = arith.mulf %16, %16 : vector<8x128xf32>
    %cst_13 = arith.constant dense<0.000000e+00> : vector<8xf32>
    %18 = vector.multi_reduction <add>, %17, %cst_13 [1] : vector<8x128xf32> to vector<8xf32>
    %19 = vector.shape_cast %18 : vector<8xf32> to vector<8x1xf32>
    %cst_14 = arith.constant 1.280000e+02 : f32
    %20 = vector.broadcast %cst_14 : f32 to vector<8x1xf32>
    %21 = arith.divf %19, %20 : vector<8x1xf32>
    %cst_15 = arith.constant 9.99999996E-13 : f32
    %22 = vector.broadcast %cst_15 : f32 to vector<8x1xf32>
    %23 = arith.addf %21, %22 : vector<8x1xf32>
    %24 = math.rsqrt %23 : vector<8x1xf32>
    %25 = vector.broadcast %24 : vector<8x1xf32> to vector<8x128xf32>
    %26 = arith.mulf %16, %25 : vector<8x128xf32>
    %27 = vector.broadcast %1 : vector<1x128xf32> to vector<8x128xf32>
    %28 = arith.mulf %26, %27 : vector<8x128xf32>
    %29 = vector.broadcast %2 : vector<1x128xf32> to vector<8x128xf32>
    %30 = arith.addf %28, %29 : vector<8x128xf32>
    %31 = arith.truncf %30 : vector<8x128xf32> to vector<8x128xbf16>
    %c0_16 = arith.constant 0 : index
    %c0_17 = arith.constant 0 : index
    %32 = vector.load %arg7[%c0_16, %c0_17] : memref<8x128xbf16, #tpu.memory_space<vmem>>, vector<8x128xbf16>
    tpu.vector_store %arg7[%c0_16, %c0_17], %31 {strides = array<i32>} : memref<8x128xbf16, #tpu.memory_space<vmem>>, vector<8x128xbf16>,
    return
  }
  func.func @transform_0(%arg0: i32) -> (i32, i32) {
    %c0_i32 = arith.constant 0 : i32
    %c0_i32_0 = arith.constant 0 : i32
    return %arg0, %c0_i32 : i32, i32
  }
  func.func @transform_1(%arg0: i32) -> (i32, i32) {
    %c0_i32 = arith.constant 0 : i32
    %c0_i32_0 = arith.constant 0 : i32
    return %arg0, %c0_i32 : i32, i32
  }
  func.func @transform_2(%arg0: i32) -> (i32, i32) {
    %c0_i32 = arith.constant 0 : i32
    %c0_i32_0 = arith.constant 0 : i32
    %c0_i32_1 = arith.constant 0 : i32
    return %c0_i32, %c0_i32_0 : i32, i32
  }
  func.func @transform_3(%arg0: i32) -> (i32, i32) {
    %c0_i32 = arith.constant 0 : i32
    %c0_i32_0 = arith.constant 0 : i32
    %c0_i32_1 = arith.constant 0 : i32
    return %c0_i32, %c0_i32_0 : i32, i32
  }
  func.func @transform_4(%arg0: i32) -> (i32, i32) {
    %c0_i32 = arith.constant 0 : i32
    %c0_i32_0 = arith.constant 0 : i32
    %c0_i32_1 = arith.constant 0 : i32
    return %c0_i32, %c0_i32_0 : i32, i32
  }
  func.func @transform_5(%arg0: i32) -> (i32, i32) {
    %c0_i32 = arith.constant 0 : i32
    %c0_i32_0 = arith.constant 0 : i32
    %c0_i32_1 = arith.constant 0 : i32
    return %c0_i32, %c0_i32_0 : i32, i32
  }
  func.func @transform_6(%arg0: i32) -> (i32, i32) {
    %c0_i32 = arith.constant 0 : i32
    %c0_i32_0 = arith.constant 0 : i32
    return %arg0, %c0_i32 : i32, i32
  }
}

</mosaic_0001>

<llo_original>
// kernel: tpu_custom_call.1
$region0: #{tpu_custom_call.1}
  #allocation0 [shape = 'u32[]', space=smem, size = 0x4, offset = 0x4, fixed_abs, tag = 'smem constant byte address 0x4 - core index']
  #allocation1 [shape = 'u32[72,128]{1,0:T(1,128)}', space=vmem, size = 0x9000, scoped, tag = 'internal scratch']
  %s0 = inlined_call_operand.hbm [shape: bf16[16,256], index: 0, kind: input, shape index: {}]
  %s1 = inlined_call_operand.hbm [shape: bf16[16,128], index: 1, kind: input, shape index: {}]
  %s2 = inlined_call_operand.hbm [shape: bf16[256,128], index: 2, kind: input, shape index: {}]
  %s3 = inlined_call_operand.vmem [shape: f32[1,128], index: 3, kind: input, shape index: {}]
  %s4 = inlined_call_operand.vmem [shape: f32[1,128], index: 4, kind: input, shape index: {}]
  %s5 = inlined_call_operand.vmem [shape: f32[1,128], index: 5, kind: input, shape index: {}]
  %s6 = inlined_call_operand.hbm [shape: bf16[16,128], index: 6, kind: output, shape index: {}]
  %s7 = sld [smem:[#allocation0]]
  $region69: #{tpu_custom_call.1} parent=0
    _
  %s9 = ssub.s32 1, %s7
  %s10 = scalar_select 0, %s9, %s7
  $region1: #{tpu_custom_call.1} parent=0
    #allocation2 [shape = 'u8[8192]{0}', space=vmem, size = 0x2000, scoped, tag = 'input window, operand 0']
    #allocation3 [shape = 's32[2]{0}', space=sflag, size = 0x8, scoped, tag = 'scoped memory for tpu_custom_call.1']
    #allocation4 [shape = 's32[2]{0}', space=sflag, size = 0x8, scoped, tag = 'scoped memory for tpu_custom_call.1']
    #allocation5 [shape = 'u8[4096]{0}', space=vmem, size = 0x1000, scoped, tag = 'input window, operand 1']
    #allocation6 [shape = 's32[2]{0}', space=sflag, size = 0x8, scoped, tag = 'scoped memory for tpu_custom_call.1']
    #allocation7 [shape = 'u8[65536]{0}', space=vmem, size = 0x10000, scoped, tag = 'input window, operand 2, single buffered']
    #allocation8 [shape = 'u8[4096]{0}', space=vmem, size = 0x1000, scoped, tag = 'output window, operand 0']
    %11 = vsyncpa [#allocation3], 0
    %s12 = scalar_lea.sflag [#allocation3], 1
    %13 = vsyncpa %s12, 0
    %14 = vsyncpa [#allocation6], 0
    %s15 = scalar_lea.sflag [#allocation6], 1
    %16 = vsyncpa %s15, 0
    %17 = vsyncpa [#allocation4], 0
    %s18 = scalar_lea.sflag [#allocation4], 1
    %19 = vsyncpa %s18, 0
    loop: start=0, step=1, limit=4
    $region2: #{tpu_custom_call.1} parent=1 // loop_pre_header
      _
    $region3: #{tpu_custom_call.1} parent=1 // loop_header
      %s21 = sphi 0, %s25
      %p22 = scmp.ge.s32.totalorder %s21, 4
      %s31 = sphi 0, %s33
      %s34 = sphi 0, %s31
      %s35 = sphi 0, %s34
      %s51 = sphi 0, %s35
      %s57 = sphi 0, %s59
      %s60 = sphi 0, %s57
      %s61 = sphi 0, %s60
      %s77 = sphi 0, %s61
      %s81 = sphi 0, %s81
      %s83 = sphi 0, %s81
      %s84 = sphi 0, %s83
      %s98 = sphi 0, %s84
      %s102 = sphi 0, %s102
      %s104 = sphi 0, %s102
      %s105 = sphi 0, %s104
      %s119 = sphi 0, %s105
      %s123 = sphi 0, %s123
      %s125 = sphi 0, %s123
      %s126 = sphi 0, %s125
      %s140 = sphi 0, %s126
      %s144 = sphi 0, %s144
      %s146 = sphi 0, %s144
      %s147 = sphi 0, %s146
      %s161 = sphi 0, %s147
      %s167 = sphi 0, %s169
      %s170 = sphi 0, %s167
      %s171 = sphi 0, %s170
      %s187 = sphi 0, %s171
    $region4: #{tpu_custom_call.1} parent=1 // loop_header_branch
      %24 = sbr.rel (%p22) target = $region8
    $region5: #{tpu_custom_call.1} parent=1 // loop_body
      %s26 = ssub.s32 %s21, 1
      %s27 = ssub.s32 %s21, 2
      %s28 = sadd.s32 %s21, 1
      %s29 = ssub.s32 %s21, %s28
      %p30 = scmp.eq.s32.totalorder %s29, 0
      %s32 = sadd.s32 %s31, 1
      %s33 = scalar_select %p30, %s31, %s32
      %p36 = pneg %p30
      %p37 = scmp.eq.s32.totalorder %s21, 1
      %p38 = por %p36, %p37
      %p39 = scmp.ne.s32.totalorder %s31, %s34
      %p40 = scmp.eq.s32.totalorder %s21, 0
      %p41 = por %p39, %p40
      %p42 = scmp.ne.s32.totalorder %s31, %s34
      %p43 = scmp.eq.s32.totalorder %s26, 1
      %p44 = por %p42, %p43
      %p45 = scmp.ne.s32.totalorder %s34, %s35
      %p46 = scmp.eq.s32.totalorder %s26, 0
      %p47 = por %p45, %p46
      %p48 = scmp.ne.s32.totalorder %s34, %s35
      %p49 = scmp.eq.s32.totalorder %s27, 1
      %p50 = por %p48, %p49
      %p52 = scmp.ne.s32.totalorder %s35, %s51
      %p53 = scmp.eq.s32.totalorder %s27, 0
      %p54 = por %p52, %p53
      %s55 = ssub.s32 %s21, %s28
      %p56 = scmp.eq.s32.totalorder %s55, 0
      %s58 = sadd.s32 %s57, 1
      %s59 = scalar_select %p56, %s57, %s58
      %p62 = pneg %p56
      %p63 = scmp.eq.s32.totalorder %s21, 1
      %p64 = por %p62, %p63
      %p65 = scmp.ne.s32.totalorder %s57, %s60
      %p66 = scmp.eq.s32.totalorder %s21, 0
      %p67 = por %p65, %p66
      %p68 = scmp.ne.s32.totalorder %s57, %s60
      %p69 = scmp.eq.s32.totalorder %s26, 1
      %p70 = por %p68, %p69
      %p71 = scmp.ne.s32.totalorder %s60, %s61
      %p72 = scmp.eq.s32.totalorder %s26, 0
      %p73 = por %p71, %p72
      %p74 = scmp.ne.s32.totalorder %s60, %s61
      %p75 = scmp.eq.s32.totalorder %s27, 1
      %p76 = por %p74, %p75
      %p78 = scmp.ne.s32.totalorder %s61, %s77
      %p79 = scmp.eq.s32.totalorder %s27, 0
      %p80 = por %p78, %p79
      %s82 = sadd.s32 %s81, 1
      %p85 = scmp.eq.s32.totalorder %s21, 1
      %p86 = scmp.ne.s32.totalorder %s81, %s83
      %p87 = scmp.eq.s32.totalorder %s21, 0
      %p88 = por %p86, %p87
      %p89 = scmp.ne.s32.totalorder %s81, %s83
      %p90 = scmp.eq.s32.totalorder %s26, 1
      %p91 = por %p89, %p90
      %p92 = scmp.ne.s32.totalorder %s83, %s84
      %p93 = scmp.eq.s32.totalorder %s26, 0
      %p94 = por %p92, %p93
      %p95 = scmp.ne.s32.totalorder %s83, %s84
      %p96 = scmp.eq.s32.totalorder %s27, 1
      %p97 = por %p95, %p96
      %p99 = scmp.ne.s32.totalorder %s84, %s98
      %p100 = scmp.eq.s32.totalorder %s27, 0
      %p101 = por %p99, %p100
      %s103 = sadd.s32 %s102, 1
      %p106 = scmp.eq.s32.totalorder %s21, 1
      %p107 = scmp.ne.s32.totalorder %s102, %s104
      %p108 = scmp.eq.s32.totalorder %s21, 0
      %p109 = por %p107, %p108
      %p110 = scmp.ne.s32.totalorder %s102, %s104
      %p111 = scmp.eq.s32.totalorder %s26, 1
      %p112 = por %p110, %p111
      %p113 = scmp.ne.s32.totalorder %s104, %s105
      %p114 = scmp.eq.s32.totalorder %s26, 0
      %p115 = por %p113, %p114
      %p116 = scmp.ne.s32.totalorder %s104, %s105
      %p117 = scmp.eq.s32.totalorder %s27, 1
      %p118 = por %p116, %p117
      %p120 = scmp.ne.s32.totalorder %s105, %s119
      %p121 = scmp.eq.s32.totalorder %s27, 0
      %p122 = por %p120, %p121
      %s124 = sadd.s32 %s123, 1
      %p127 = scmp.eq.s32.totalorder %s21, 1
      %p128 = scmp.ne.s32.totalorder %s123, %s125
      %p129 = scmp.eq.s32.totalorder %s21, 0
      %p130 = por %p128, %p129
      %p131 = scmp.ne.s32.totalorder %s123, %s125
      %p132 = scmp.eq.s32.totalorder %s26, 1
      %p133 = por %p131, %p132
      %p134 = scmp.ne.s32.totalorder %s125, %s126
      %p135 = scmp.eq.s32.totalorder %s26, 0
      %p136 = por %p134, %p135
      %p137 = scmp.ne.s32.totalorder %s125, %s126
      %p138 = scmp.eq.s32.totalorder %s27, 1
      %p139 = por %p137, %p138
      %p141 = scmp.ne.s32.totalorder %s126, %s140
      %p142 = scmp.eq.s32.totalorder %s27, 0
      %p143 = por %p141, %p142
      %s145 = sadd.s32 %s144, 1
      %p148 = scmp.eq.s32.totalorder %s21, 1
      %p149 = scmp.ne.s32.totalorder %s144, %s146
      %p150 = scmp.eq.s32.totalorder %s21, 0
      %p151 = por %p149, %p150
      %p152 = scmp.ne.s32.totalorder %s144, %s146
      %p153 = scmp.eq.s32.totalorder %s26, 1
      %p154 = por %p152, %p153
      %p155 = scmp.ne.s32.totalorder %s146, %s147
      %p156 = scmp.eq.s32.totalorder %s26, 0
      %p157 = por %p155, %p156
      %p158 = scmp.ne.s32.totalorder %s146, %s147
      %p159 = scmp.eq.s32.totalorder %s27, 1
      %p160 = por %p158, %p159
      %p162 = scmp.ne.s32.totalorder %s147, %s161
      %p163 = scmp.eq.s32.totalorder %s27, 0
      %p164 = por %p162, %p163
      %s165 = ssub.s32 %s21, %s28
      %p166 = scmp.eq.s32.totalorder %s165, 0
      %s168 = sadd.s32 %s167, 1
      %s169 = scalar_select %p166, %s167, %s168
      %p172 = pneg %p166
      %p173 = scmp.eq.s32.totalorder %s21, 1
      %p174 = por %p172, %p173
      %p175 = scmp.ne.s32.totalorder %s167, %s170
      %p176 = scmp.eq.s32.totalorder %s21, 0
      %p177 = por %p175, %p176
      %p178 = scmp.ne.s32.totalorder %s167, %s170
      %p179 = scmp.eq.s32.totalorder %s26, 1
      %p180 = por %p178, %p179
      %p181 = scmp.ne.s32.totalorder %s170, %s171
      %p182 = scmp.eq.s32.totalorder %s26, 0
      %p183 = por %p181, %p182
      %p184 = scmp.ne.s32.totalorder %s170, %s171
      %p185 = scmp.eq.s32.totalorder %s27, 1
      %p186 = por %p184, %p185
      %p188 = scmp.ne.s32.totalorder %s171, %s187
      %p189 = scmp.eq.s32.totalorder %s27, 0
      %p190 = por %p188, %p189
      %p191 = scmp.le.s32.totalorder 1, %s21
      %p192 = scmp.lt.s32.totalorder %s21, 3
      %p193 = pnand %p191, %p192
      %p194 = pneg %p193
      // Predicated region
      $region9: #{tpu_custom_call.1} parent=5 // pred_check
        _
      $region10: #{tpu_custom_call.1} parent=5 // pred_check_branch
        %196 = sbr.rel (%p193) target = $region12
      $region11: #{tpu_custom_call.1} parent=5 // pred_region
        %s197 = ssub.s32 %s21, 1
        // Predicated region
        $region13: #{tpu_custom_call.1} parent=11 // pred_check
          %p198 = pneg %p94
        $region14: #{tpu_custom_call.1} parent=11 // pred_check_branch
          %200 = sbr.rel (%p198) target = $region16
        $region15: #{tpu_custom_call.1} parent=11 // pred_region
          %202 = vsyncadd [#allocation6], 0
          %s203 = sshll.u32 %s2, 4
          %s204 = int_to_ptr.hbm [resolvable:$true] %s203
          %s205 = sshll.u32 [#allocation7], 4
          %s206 = int_to_ptr.vmem [resolvable:$true] %s205
          %211 = dma.hbm_to_vmem [thread:$0]  %s204, 2048, %s206, [#allocation6], 64, 64, 4
        $region16: #{tpu_custom_call.1} parent=11 // pred_fallthru
          _
        // Predicated region
        $region17: #{tpu_custom_call.1} parent=11 // pred_check
          %p212 = pneg %p115
        $region18: #{tpu_custom_call.1} parent=11 // pred_check_branch
          %214 = sbr.rel (%p212) target = $region20
        $region19: #{tpu_custom_call.1} parent=11 // pred_region
          _
        $region20: #{tpu_custom_call.1} parent=11 // pred_fallthru
          _
        // Predicated region
        $region21: #{tpu_custom_call.1} parent=11 // pred_check
          %p215 = pneg %p136
        $region22: #{tpu_custom_call.1} parent=11 // pred_check_branch
          %217 = sbr.rel (%p215) target = $region24
        $region23: #{tpu_custom_call.1} parent=11 // pred_region
          _
        $region24: #{tpu_custom_call.1} parent=11 // pred_fallthru
          _
        // Predicated region
        $region25: #{tpu_custom_call.1} parent=11 // pred_check
          %p218 = pneg %p157
        $region26: #{tpu_custom_call.1} parent=11 // pred_check_branch
          %220 = sbr.rel (%p218) target = $region28
        $region27: #{tpu_custom_call.1} parent=11 // pred_region
          _
        $region28: #{tpu_custom_call.1} parent=11 // pred_fallthru
          _
      $region12: #{tpu_custom_call.1} parent=5 // pred_fallthru
        _
      %p221 = scmp.lt.s32.totalorder %s21, 2
      // Predicated region
      $region29: #{tpu_custom_call.1} parent=5 // pred_check
        %p222 = pneg %p221
      $region30: #{tpu_custom_call.1} parent=5 // pred_check_branch
        %224 = sbr.rel (%p222) target = $region32
      $region31: #{tpu_custom_call.1} parent=5 // pred_region
        // Predicated region
        $region33: #{tpu_custom_call.1} parent=31 // pred_check
          %p225 = pneg %p41
        $region34: #{tpu_custom_call.1} parent=31 // pred_check_branch
          %227 = sbr.rel (%p225) target = $region36
        $region35: #{tpu_custom_call.1} parent=31 // pred_region
          %s228 = sand.u32 %s31, 1
          %s229 = scalar_lea.sflag [#allocation3], %s228
          %s230 = sand.u32 %s31, 1
          %s231 = smul.addr %s230, 8
          %s232 = scalar_lea.vmem [#allocation2], %s231
          %234 = vsyncadd %s229, 0
          %s235 = smul.addr %s21, 2
          %s236 = smul.addr %s235, 4
          %s237 = scalar_lea.hbm %s0, %s236
          %s239 = sshll.u32 %s237, 4
          %s240 = int_to_ptr.hbm [resolvable:$true] %s239
          %s241 = sshll.u32 %s232, 4
          %s242 = int_to_ptr.vmem [resolvable:$true] %s241
          %244 = dma.hbm_to_vmem [thread:$0]  %s240, 128, %s242, %s229
        $region36: #{tpu_custom_call.1} parent=31 // pred_fallthru
          _
        // Predicated region
        $region37: #{tpu_custom_call.1} parent=31 // pred_check
          %p245 = pneg %p67
        $region38: #{tpu_custom_call.1} parent=31 // pred_check_branch
          %247 = sbr.rel (%p245) target = $region40
        $region39: #{tpu_custom_call.1} parent=31 // pred_region
          %s248 = sand.u32 %s21, 1
          %s249 = scalar_lea.sflag [#allocation6], %s248
          %s250 = sand.u32 %s57, 1
          %s251 = smul.addr %s250, 4
          %s252 = scalar_lea.vmem [#allocation5], %s251
          %254 = vsyncadd %s249, 0
          %s255 = smul.addr %s21, 4
          %s256 = scalar_lea.hbm %s1, %s255
          %s258 = sshll.u32 %s256, 4
          %s259 = int_to_ptr.hbm [resolvable:$true] %s258
          %s260 = sshll.u32 %s252, 4
          %s261 = int_to_ptr.vmem [resolvable:$true] %s260
          %263 = dma.hbm_to_vmem [thread:$0]  %s259, 64, %s261, %s249
        $region40: #{tpu_custom_call.1} parent=31 // pred_fallthru
          _
      $region32: #{tpu_custom_call.1} parent=5 // pred_fallthru
        _
      %p264 = scmp.le.s32.totalorder 1, %s21
      %p265 = scmp.lt.s32.totalorder %s21, 3
      %p266 = pnand %p264, %p265
      %p267 = pneg %p266
      // Predicated region
      $region41: #{tpu_custom_call.1} parent=5 // pred_check
        _
      $region42: #{tpu_custom_call.1} parent=5 // pred_check_branch
        %269 = sbr.rel (%p266) target = $region44
      $region43: #{tpu_custom_call.1} parent=5 // pred_region
        %s270 = ssub.s32 %s21, 1
        %s271 = sand.u32 %s34, 1
        %s272 = scalar_lea.sflag [#allocation3], %s271
        %s273 = sand.u32 %s34, 1
        %s274 = smul.addr %s273, 8
        %s275 = scalar_lea.vmem [#allocation2], %s274
        // Predicated region
        $region45: #{tpu_custom_call.1} parent=43 // pred_check
          %p276 = pneg %p47
        $region46: #{tpu_custom_call.1} parent=43 // pred_check_branch
          %278 = sbr.rel (%p276) target = $region48
        $region47: #{tpu_custom_call.1} parent=43 // pred_region
          %280 = dma.done %s272, 128
        $region48: #{tpu_custom_call.1} parent=43 // pred_fallthru
          _
        %s281 = sand.u32 %s26, 1
        %s282 = scalar_lea.sflag [#allocation6], %s281
        %s283 = sand.u32 %s60, 1
        %s284 = smul.addr %s283, 4
        %s285 = scalar_lea.vmem [#allocation5], %s284
        // Predicated region
        $region49: #{tpu_custom_call.1} parent=43 // pred_check
          %p286 = pneg %p73
        $region50: #{tpu_custom_call.1} parent=43 // pred_check_branch
          %288 = sbr.rel (%p286) target = $region52
        $region51: #{tpu_custom_call.1} parent=43 // pred_region
          %290 = dma.done %s282, 64
        $region52: #{tpu_custom_call.1} parent=43 // pred_fallthru
          _
        // Predicated region
        $region53: #{tpu_custom_call.1} parent=43 // pred_check
          %p291 = pneg %p94
        $region54: #{tpu_custom_call.1} parent=43 // pred_check_branch
          %293 = sbr.rel (%p291) target = $region56
        $region55: #{tpu_custom_call.1} parent=43 // pred_region
          %295 = dma.done [#allocation6], 2048
        $region56: #{tpu_custom_call.1} parent=43 // pred_fallthru
          _
        %s296 = sand.u32 %s34, 1
        %s297 = scalar_lea.sflag [#allocation3], %s296
        %s298 = sand.u32 %s34, 1
        %s299 = smul.addr %s298, 8
        %s300 = scalar_lea.vmem [#allocation2], %s299
        %p301 = pneg %p47
        %p302 = pneg %p44
        %s303 = sand.u32 %s26, 1
        %s304 = scalar_lea.sflag [#allocation6], %s303
        %s305 = sand.u32 %s60, 1
        %s306 = smul.addr %s305, 4
        %s307 = scalar_lea.vmem [#allocation5], %s306
        %p308 = pneg %p73
        %p309 = pneg %p70
        %p310 = pneg %p94
        %p311 = pneg %p91
        %p312 = pneg %p115
        %p313 = pneg %p112
        %p314 = pneg %p136
        %p315 = pneg %p133
        %p316 = pneg %p157
        %p317 = pneg %p154
        %p318 = pneg %p183
        %p319 = pneg %p180
        %s320 = sand.u32 %s170, 1
        %s321 = scalar_lea.sflag [#allocation4], %s320
        %s322 = sand.u32 %s170, 1
        %s323 = smul.addr %s322, 4
        %s324 = scalar_lea.vmem [#allocation8], %s323
        %v325 = vld [vmem:[%s3] sm:$0x1]
        %v326 = vld [vmem:[%s4] sm:$0x1]
        %v327 = vld [vmem:[%s5] sm:$0x1]
        %v328 = vld [vmem:[%s275] sm:$0xff]
        %v329 = vld [vmem:[#allocation7] sm:$0xf]
        %v330 = vld [vmem:[#allocation7 + $0x4] sm:$0xf]
        %v331 = vld [vmem:[#allocation7 + $0x8] sm:$0xf]
        %v332 = vld [vmem:[#allocation7 + $0xc] sm:$0xf]
        %v333 = vld [vmem:[#allocation7 + $0x10] sm:$0xf]
        %v334 = vld [vmem:[#allocation7 + $0x14] sm:$0xf]
        %v335 = vld [vmem:[#allocation7 + $0x18] sm:$0xf]
        %v336 = vld [vmem:[#allocation7 + $0x1c] sm:$0xf]
        %v337 = vld [vmem:[#allocation7 + $0x20] sm:$0xf]
        %v338 = vld [vmem:[#allocation7 + $0x24] sm:$0xf]
        %v339 = vld [vmem:[#allocation7 + $0x28] sm:$0xf]
        %v340 = vld [vmem:[#allocation7 + $0x2c] sm:$0xf]
        %v341 = vld [vmem:[#allocation7 + $0x30] sm:$0xf]
        %v342 = vld [vmem:[#allocation7 + $0x34] sm:$0xf]
        %v343 = vld [vmem:[#allocation7 + $0x38] sm:$0xf]
        %v344 = vld [vmem:[#allocation7 + $0x3c] sm:$0xf]
        %v345 = vld [vmem:[#allocation7 + $0x40] sm:$0xf]
        %v346 = vld [vmem:[#allocation7 + $0x44] sm:$0xf]
        %v347 = vld [vmem:[#allocation7 + $0x48] sm:$0xf]
        %v348 = vld [vmem:[#allocation7 + $0x4c] sm:$0xf]
        %v349 = vld [vmem:[#allocation7 + $0x50] sm:$0xf]
        %v350 = vld [vmem:[#allocation7 + $0x54] sm:$0xf]
        %v351 = vld [vmem:[#allocation7 + $0x58] sm:$0xf]
        %v352 = vld [vmem:[#allocation7 + $0x5c] sm:$0xf]
        %v353 = vld [vmem:[#allocation7 + $0x60] sm:$0xf]
        %v354 = vld [vmem:[#allocation7 + $0x64] sm:$0xf]
        %v355 = vld [vmem:[#allocation7 + $0x68] sm:$0xf]
        %v356 = vld [vmem:[#allocation7 + $0x6c] sm:$0xf]
        %v357 = vld [vmem:[#allocation7 + $0x70] sm:$0xf]
        %v358 = vld [vmem:[#allocation7 + $0x74] sm:$0xf]
        %v359 = vld [vmem:[#allocation7 + $0x78] sm:$0xf]
        %v360 = vld [vmem:[#allocation7 + $0x7c] sm:$0xf]
        %v361 = vld [vmem:[%s285] sm:$0xf]
        %v362 = vunpack.c.l.bf16 %v361
        %v364 = vperm.slane %v325, 0
        %v366 = vadd.f32 %v362, %v364
        %v368 = vunpack.c.l.b16 %v328
        %v369 = vunpack.c.h.b16 %v328
        %v370 = vpack.c.b16 %v368, %v368
        %v371 = vpack.c.b16 %v369, %v369
        %v406 = vunpack.c.l.b16 %v329
        %v407 = vunpack.c.l.b16 %v330
        %v408 = vunpack.c.l.b16 %v331
        %v409 = vunpack.c.l.b16 %v332
        %v410 = vunpack.c.l.b16 %v333
        %v411 = vunpack.c.l.b16 %v334
        %v412 = vunpack.c.l.b16 %v335
        %v413 = vunpack.c.l.b16 %v336
        %v414 = vunpack.c.l.b16 %v337
        %v415 = vunpack.c.l.b16 %v338
        %v416 = vunpack.c.l.b16 %v339
        %v417 = vunpack.c.l.b16 %v340
        %v418 = vunpack.c.l.b16 %v341
        %v419 = vunpack.c.l.b16 %v342
        %v420 = vunpack.c.l.b16 %v343
        %v421 = vunpack.c.l.b16 %v344
        %v422 = vunpack.c.l.b16 %v345
        %v423 = vunpack.c.l.b16 %v346
        %v424 = vunpack.c.l.b16 %v347
        %v425 = vunpack.c.l.b16 %v348
        %v426 = vunpack.c.l.b16 %v349
        %v427 = vunpack.c.l.b16 %v350
        %v428 = vunpack.c.l.b16 %v351
        %v429 = vunpack.c.l.b16 %v352
        %v430 = vunpack.c.l.b16 %v353
        %v431 = vunpack.c.l.b16 %v354
        %v432 = vunpack.c.l.b16 %v355
        %v433 = vunpack.c.l.b16 %v356
        %v434 = vunpack.c.l.b16 %v357
        %v435 = vunpack.c.l.b16 %v358
        %v436 = vunpack.c.l.b16 %v359
        %v437 = vunpack.c.l.b16 %v360
        %v438 = vpack.c.b16 %v407, %v406
        %v439 = vpack.c.b16 %v409, %v408
        %v440 = vpack.c.b16 %v411, %v410
        %v441 = vpack.c.b16 %v413, %v412
        %v442 = vpack.c.b16 %v415, %v414
        %v443 = vpack.c.b16 %v417, %v416
        %v444 = vpack.c.b16 %v419, %v418
        %v445 = vpack.c.b16 %v421, %v420
        %v446 = vpack.c.b16 %v423, %v422
        %v447 = vpack.c.b16 %v425, %v424
        %v448 = vpack.c.b16 %v427, %v426
        %v449 = vpack.c.b16 %v429, %v428
        %v450 = vpack.c.b16 %v431, %v430
        %v451 = vpack.c.b16 %v433, %v432
        %v452 = vpack.c.b16 %v435, %v434
        %v453 = vpack.c.b16 %v437, %v436
        %470 = vmatpush.bf16.msra.mxu0 %v445
        %471 = vmatpush.bf16.msra.mxu0 %v444
        %472 = vmatpush.bf16.msra.mxu0 %v443
        %473 = vmatpush.bf16.msra.mxu0 %v442
        %474 = vmatpush.bf16.msra.mxu0 %v441
        %475 = vmatpush.bf16.msra.mxu0 %v440
        %476 = vmatpush.bf16.msra.mxu0 %v439
        %477 = vmatpush.bf16.msra.mxu0 %v438
        %478 = vmatmul.bf16.gmra.mxu0 %v370
        %v479 = vpop.f32.mrf.mxu0
        %v480 = vadd.f32 %v366, %v479
        %v481 = vpop.f32.mrf.mxu0
        %482 = vdwg.mxu0
        %483 = vmatpush.bf16.msra.mxu0 %v453
        %484 = vmatpush.bf16.msra.mxu0 %v452
        %485 = vmatpush.bf16.msra.mxu0 %v451
        %486 = vmatpush.bf16.msra.mxu0 %v450
        %487 = vmatpush.bf16.msra.mxu0 %v449
        %488 = vmatpush.bf16.msra.mxu0 %v448
        %489 = vmatpush.bf16.msra.mxu0 %v447
        %490 = vmatpush.bf16.msra.mxu0 %v446
        %491 = vmatmul.bf16.gmra.mxu0 %v371
        %v492 = vpop.f32.mrf.mxu0
        %v493 = vadd.f32 %v480, %v492
        %v494 = vpop.f32.mrf.mxu0
        %495 = vdwg.mxu0
        %496 = vadd.xlane.f32.xlu0 %v493
        %v497 = vpop.xlane.xlu0 %496
        %v498 = vrcp.pop 128.0
        %v499 = vmul.f32 128.0, %v498
        %v500 = vsub.f32 1.0, %v499
        %v501 = vmul.f32 %v498, %v500
        %v502 = vadd.f32 %v498, %v501
        %vm503 = vweird.f32 %v498
        %v504 = vsel %vm503, %v498, %v502
        %v505 = vmul.f32 %v497, %v504
        %v506 = vsub.f32 %v493, %v505
        %v507 = vmul.f32 %v506, %v506
        %508 = vadd.xlane.f32.xlu0 %v507
        %v509 = vpop.xlane.xlu0 %508
        %v510 = vmul.f32 %v509, %v504
        %v511 = vadd.f32 %v510, 1e-12
        %v512 = vrsqrt.pop %v511
        %v513 = vmul.f32 %v512, %v511
        %v514 = vmul.f32 %v513, %v512
        %v515 = vmul.f32 0.5, %v514
        %v516 = vsub.f32 1.5, %v515
        %v517 = vmul.f32 %v512, %v516
        %vm518 = vweird.f32 %v511
        %vm519 = vweird.f32 %v512
        %vm520 = vmor %vm518, %vm519
        %v521 = vsel %vm520, %v512, %v517
        %v522 = vmul.f32 %v506, %v521
        %v524 = vperm.slane %v326, 0
        %v526 = vmul.f32 %v522, %v524
        %v528 = vperm.slane %v327, 0
        %v530 = vadd.f32 %v526, %v528
        %v531 = vpack.c.bf16 %v530, %v530
        %532 = vst [vmem:[%s324] sm:$0xf] %v531
        %s533 = sand.u32 %s170, 1
        %s534 = scalar_lea.sflag [#allocation4], %s533
        %s535 = sand.u32 %s170, 1
        %s536 = smul.addr %s535, 4
        %s537 = scalar_lea.vmem [#allocation8], %s536
        // Predicated region
        $region57: #{tpu_custom_call.1} parent=43 // pred_check
          %p538 = pneg %p180
        $region58: #{tpu_custom_call.1} parent=43 // pred_check_branch
          %540 = sbr.rel (%p538) target = $region60
        $region59: #{tpu_custom_call.1} parent=43 // pred_region
          %542 = vsyncadd %s534, 0
          %s543 = smul.addr %s26, 4
          %s544 = scalar_lea.hbm %s6, %s543
          %s546 = sshll.u32 %s537, 4
          %s547 = int_to_ptr.vmem [resolvable:$true] %s546
          %s548 = sshll.u32 %s544, 4
          %s549 = int_to_ptr.hbm [resolvable:$true] %s548
          %551 = dma.vmem_to_hbm [thread:$0]  %s547, 64, %s549, %s534
        $region60: #{tpu_custom_call.1} parent=43 // pred_fallthru
          _
      $region44: #{tpu_custom_call.1} parent=5 // pred_fallthru
        _
      %p552 = scmp.le.s32.totalorder 2, %s21
      // Predicated region
      $region61: #{tpu_custom_call.1} parent=5 // pred_check
        %p553 = pneg %p552
      $region62: #{tpu_custom_call.1} parent=5 // pred_check_branch
        %555 = sbr.rel (%p553) target = $region64
      $region63: #{tpu_custom_call.1} parent=5 // pred_region
        %s556 = ssub.s32 %s21, 2
        // Predicated region
        $region65: #{tpu_custom_call.1} parent=63 // pred_check
          %p557 = pneg %p186
        $region66: #{tpu_custom_call.1} parent=63 // pred_check_branch
          %559 = sbr.rel (%p557) target = $region68
        $region67: #{tpu_custom_call.1} parent=63 // pred_region
          %s560 = sand.u32 %s171, 1
          %s561 = scalar_lea.sflag [#allocation4], %s560
          %s562 = sand.u32 %s171, 1
          %s563 = smul.addr %s562, 4
          %s564 = scalar_lea.vmem [#allocation8], %s563
          %566 = dma.done %s561, 64
        $region68: #{tpu_custom_call.1} parent=63 // pred_fallthru
          _
      $region64: #{tpu_custom_call.1} parent=5 // pred_fallthru
        _
    $region6: #{tpu_custom_call.1} parent=1 // loop_footer
      %s25 = sadd.s32 1, %s21
    $region7: #{tpu_custom_call.1} parent=1 // loop_footer_branch
      %20 = sbr.rel target = $region3
    $region8: #{tpu_custom_call.1} parent=1 // loop_exit
      _
    %567 = vsyncpa [#allocation3], 1
    %s568 = scalar_lea.sflag [#allocation3], 1
    %569 = vsyncpa %s568, 1
    %570 = vsyncpa [#allocation6], 1
    %s571 = scalar_lea.sflag [#allocation6], 1
    %572 = vsyncpa %s571, 1
    %573 = vsyncpa [#allocation4], 1
    %s574 = scalar_lea.sflag [#allocation4], 1
    %575 = vsyncpa %s574, 1

// kernel: tpu_custom_call.1
$region0: #{tpu_custom_call.1}
  #allocation0 [shape = 'u32[]', space=smem, size = 0x4, offset = 0x4, fixed_abs, tag = 'smem constant byte address 0x4 - core index']
  #allocation1 [shape = 'u32[72,128]{1,0:T(1,128)}', space=vmem, size = 0x9000, scoped, tag = 'internal scratch']
  %s0 = inlined_call_operand.hbm [shape: bf16[16,256], index: 0, kind: input, shape index: {}]
  %s1 = inlined_call_operand.hbm [shape: bf16[16,128], index: 1, kind: input, shape index: {}]
  %s2 = inlined_call_operand.hbm [shape: bf16[256,128], index: 2, kind: input, shape index: {}]
  %s3 = inlined_call_operand.vmem [shape: f32[1,128], index: 3, kind: input, shape index: {}]
  %s4 = inlined_call_operand.vmem [shape: f32[1,128], index: 4, kind: input, shape index: {}]
  %s5 = inlined_call_operand.vmem [shape: f32[1,128], index: 5, kind: input, shape index: {}]
  %s6 = inlined_call_operand.hbm [shape: bf16[16,128], index: 6, kind: output, shape index: {}]
  %s7 = sld [smem:[#allocation0]]
  $region69: #{tpu_custom_call.1} parent=0
    _
  %s9 = ssub.s32 1, %s7
  %s10 = scalar_select 0, %s9, %s7
  $region1: #{tpu_custom_call.1} parent=0
    #allocation2 [shape = 'u8[8192]{0}', space=vmem, size = 0x2000, scoped, tag = 'input window, operand 0']
    #allocation3 [shape = 's32[2]{0}', space=sflag, size = 0x8, scoped, tag = 'scoped memory for tpu_custom_call.1']
    #allocation4 [shape = 's32[2]{0}', space=sflag, size = 0x8, scoped, tag = 'scoped memory for tpu_custom_call.1']
    #allocation5 [shape = 'u8[4096]{0}', space=vmem, size = 0x1000, scoped, tag = 'input window, operand 1']
    #allocation6 [shape = 's32[2]{0}', space=sflag, size = 0x8, scoped, tag = 'scoped memory for tpu_custom_call.1']
    #allocation7 [shape = 'u8[65536]{0}', space=vmem, size = 0x10000, scoped, tag = 'input window, operand 2, single buffered']
    #allocation8 [shape = 'u8[4096]{0}', space=vmem, size = 0x1000, scoped, tag = 'output window, operand 0']
    %11 = vsyncpa [#allocation3], 0
    %s12 = scalar_lea.sflag [#allocation3], 1
    %13 = vsyncpa %s12, 0
    %14 = vsyncpa [#allocation6], 0
    %s15 = scalar_lea.sflag [#allocation6], 1
    %16 = vsyncpa %s15, 0
    %17 = vsyncpa [#allocation4], 0
    %s18 = scalar_lea.sflag [#allocation4], 1
    %19 = vsyncpa %s18, 0
    loop: start=0, step=1, limit=4
    $region2: #{tpu_custom_call.1} parent=1 // loop_pre_header
      _
    $region3: #{tpu_custom_call.1} parent=1 // loop_header
      %s21 = sphi 0, %s25
      %p22 = scmp.ge.s32.totalorder %s21, 4
      %s31 = sphi 0, %s33
      %s34 = sphi 0, %s31
      %s35 = sphi 0, %s34
      %s51 = sphi 0, %s35
      %s57 = sphi 0, %s59
      %s60 = sphi 0, %s57
      %s61 = sphi 0, %s60
      %s77 = sphi 0, %s61
      %s81 = sphi 0, %s81
      %s83 = sphi 0, %s81
      %s84 = sphi 0, %s83
      %s98 = sphi 0, %s84
      %s102 = sphi 0, %s102
      %s104 = sphi 0, %s102
      %s105 = sphi 0, %s104
      %s119 = sphi 0, %s105
      %s123 = sphi 0, %s123
      %s125 = sphi 0, %s123
      %s126 = sphi 0, %s125
      %s140 = sphi 0, %s126
      %s144 = sphi 0, %s144
      %s146 = sphi 0, %s144
      %s147 = sphi 0, %s146
      %s161 = sphi 0, %s147
      %s167 = sphi 0, %s169
      %s170 = sphi 0, %s167
      %s171 = sphi 0, %s170
      %s187 = sphi 0, %s171
    $region4: #{tpu_custom_call.1} parent=1 // loop_header_branch
      %24 = sbr.rel (%p22) target = $region8
    $region5: #{tpu_custom_call.1} parent=1 // loop_body
      %s26 = ssub.s32 %s21, 1
      %s27 = ssub.s32 %s21, 2
      %s28 = sadd.s32 %s21, 1
      %s29 = ssub.s32 %s21, %s28
      %p30 = scmp.eq.s32.totalorder %s29, 0
      %s32 = sadd.s32 %s31, 1
      %s33 = scalar_select %p30, %s31, %s32
      %p36 = pneg %p30
      %p37 = scmp.eq.s32.totalorder %s21, 1
      %p38 = por %p36, %p37
      %p39 = scmp.ne.s32.totalorder %s31, %s34
      %p40 = scmp.eq.s32.totalorder %s21, 0
      %p41 = por %p39, %p40
      %p42 = scmp.ne.s32.totalorder %s31, %s34
      %p43 = scmp.eq.s32.totalorder %s26, 1
      %p44 = por %p42, %p43
      %p45 = scmp.ne.s32.totalorder %s34, %s35
      %p46 = scmp.eq.s32.totalorder %s26, 0
      %p47 = por %p45, %p46
      %p48 = scmp.ne.s32.totalorder %s34, %s35
      %p49 = scmp.eq.s32.totalorder %s27, 1
      %p50 = por %p48, %p49
      %p52 = scmp.ne.s32.totalorder %s35, %s51
      %p53 = scmp.eq.s32.totalorder %s27, 0
      %p54 = por %p52, %p53
      %s55 = ssub.s32 %s21, %s28
      %p56 = scmp.eq.s32.totalorder %s55, 0
      %s58 = sadd.s32 %s57, 1
      %s59 = scalar_select %p56, %s57, %s58
      %p62 = pneg %p56
      %p63 = scmp.eq.s32.totalorder %s21, 1
      %p64 = por %p62, %p63
      %p65 = scmp.ne.s32.totalorder %s57, %s60
      %p66 = scmp.eq.s32.totalorder %s21, 0
      %p67 = por %p65, %p66
      %p68 = scmp.ne.s32.totalorder %s57, %s60
      %p69 = scmp.eq.s32.totalorder %s26, 1
      %p70 = por %p68, %p69
      %p71 = scmp.ne.s32.totalorder %s60, %s61
      %p72 = scmp.eq.s32.totalorder %s26, 0
      %p73 = por %p71, %p72
      %p74 = scmp.ne.s32.totalorder %s60, %s61
      %p75 = scmp.eq.s32.totalorder %s27, 1
      %p76 = por %p74, %p75
      %p78 = scmp.ne.s32.totalorder %s61, %s77
      %p79 = scmp.eq.s32.totalorder %s27, 0
      %p80 = por %p78, %p79
      %s82 = sadd.s32 %s81, 1
      %p85 = scmp.eq.s32.totalorder %s21, 1
      %p86 = scmp.ne.s32.totalorder %s81, %s83
      %p87 = scmp.eq.s32.totalorder %s21, 0
      %p88 = por %p86, %p87
      %p89 = scmp.ne.s32.totalorder %s81, %s83
      %p90 = scmp.eq.s32.totalorder %s26, 1
      %p91 = por %p89, %p90
      %p92 = scmp.ne.s32.totalorder %s83, %s84
      %p93 = scmp.eq.s32.totalorder %s26, 0
      %p94 = por %p92, %p93
      %p95 = scmp.ne.s32.totalorder %s83, %s84
      %p96 = scmp.eq.s32.totalorder %s27, 1
      %p97 = por %p95, %p96
      %p99 = scmp.ne.s32.totalorder %s84, %s98
      %p100 = scmp.eq.s32.totalorder %s27, 0
      %p101 = por %p99, %p100
      %s103 = sadd.s32 %s102, 1
      %p106 = scmp.eq.s32.totalorder %s21, 1
      %p107 = scmp.ne.s32.totalorder %s102, %s104
      %p108 = scmp.eq.s32.totalorder %s21, 0
      %p109 = por %p107, %p108
      %p110 = scmp.ne.s32.totalorder %s102, %s104
      %p111 = scmp.eq.s32.totalorder %s26, 1
      %p112 = por %p110, %p111
      %p113 = scmp.ne.s32.totalorder %s104, %s105
      %p114 = scmp.eq.s32.totalorder %s26, 0
      %p115 = por %p113, %p114
      %p116 = scmp.ne.s32.totalorder %s104, %s105
      %p117 = scmp.eq.s32.totalorder %s27, 1
      %p118 = por %p116, %p117
      %p120 = scmp.ne.s32.totalorder %s105, %s119
      %p121 = scmp.eq.s32.totalorder %s27, 0
      %p122 = por %p120, %p121
      %s124 = sadd.s32 %s123, 1
      %p127 = scmp.eq.s32.totalorder %s21, 1
      %p128 = scmp.ne.s32.totalorder %s123, %s125
      %p129 = scmp.eq.s32.totalorder %s21, 0
      %p130 = por %p128, %p129
      %p131 = scmp.ne.s32.totalorder %s123, %s125
      %p132 = scmp.eq.s32.totalorder %s26, 1
      %p133 = por %p131, %p132
      %p134 = scmp.ne.s32.totalorder %s125, %s126
      %p135 = scmp.eq.s32.totalorder %s26, 0
      %p136 = por %p134, %p135
      %p137 = scmp.ne.s32.totalorder %s125, %s126
      %p138 = scmp.eq.s32.totalorder %s27, 1
      %p139 = por %p137, %p138
      %p141 = scmp.ne.s32.totalorder %s126, %s140
      %p142 = scmp.eq.s32.totalorder %s27, 0
      %p143 = por %p141, %p142
      %s145 = sadd.s32 %s144, 1
      %p148 = scmp.eq.s32.totalorder %s21, 1
      %p149 = scmp.ne.s32.totalorder %s144, %s146
      %p150 = scmp.eq.s32.totalorder %s21, 0
      %p151 = por %p149, %p150
      %p152 = scmp.ne.s32.totalorder %s144, %s146
      %p153 = scmp.eq.s32.totalorder %s26, 1
      %p154 = por %p152, %p153
      %p155 = scmp.ne.s32.totalorder %s146, %s147
      %p156 = scmp.eq.s32.totalorder %s26, 0
      %p157 = por %p155, %p156
      %p158 = scmp.ne.s32.totalorder %s146, %s147
      %p159 = scmp.eq.s32.totalorder %s27, 1
      %p160 = por %p158, %p159
      %p162 = scmp.ne.s32.totalorder %s147, %s161
      %p163 = scmp.eq.s32.totalorder %s27, 0
      %p164 = por %p162, %p163
      %s165 = ssub.s32 %s21, %s28
      %p166 = scmp.eq.s32.totalorder %s165, 0
      %s168 = sadd.s32 %s167, 1
      %s169 = scalar_select %p166, %s167, %s168
      %p172 = pneg %p166
      %p173 = scmp.eq.s32.totalorder %s21, 1
      %p174 = por %p172, %p173
      %p175 = scmp.ne.s32.totalorder %s167, %s170
      %p176 = scmp.eq.s32.totalorder %s21, 0
      %p177 = por %p175, %p176
      %p178 = scmp.ne.s32.totalorder %s167, %s170
      %p179 = scmp.eq.s32.totalorder %s26, 1
      %p180 = por %p178, %p179
      %p181 = scmp.ne.s32.totalorder %s170, %s171
      %p182 = scmp.eq.s32.totalorder %s26, 0
      %p183 = por %p181, %p182
      %p184 = scmp.ne.s32.totalorder %s170, %s171
      %p185 = scmp.eq.s32.totalorder %s27, 1
      %p186 = por %p184, %p185
      %p188 = scmp.ne.s32.totalorder %s171, %s187
      %p189 = scmp.eq.s32.totalorder %s27, 0
      %p190 = por %p188, %p189
      %p191 = scmp.le.s32.totalorder 1, %s21
      %p192 = scmp.lt.s32.totalorder %s21, 3
      %p193 = pnand %p191, %p192
      %p194 = pneg %p193
      // Predicated region
      $region9: #{tpu_custom_call.1} parent=5 // pred_check
        _
      $region10: #{tpu_custom_call.1} parent=5 // pred_check_branch
        %196 = sbr.rel (%p193) target = $region12
      $region11: #{tpu_custom_call.1} parent=5 // pred_region
        %s197 = ssub.s32 %s21, 1
        // Predicated region
        $region13: #{tpu_custom_call.1} parent=11 // pred_check
          %p198 = pneg %p94
        $region14: #{tpu_custom_call.1} parent=11 // pred_check_branch
          %200 = sbr.rel (%p198) target = $region16
        $region15: #{tpu_custom_call.1} parent=11 // pred_region
          %202 = vsyncadd [#allocation6], 0
          %s203 = sshll.u32 %s2, 4
          %s204 = int_to_ptr.hbm [resolvable:$true] %s203
          %s205 = sshll.u32 [#allocation7], 4
          %s206 = int_to_ptr.vmem [resolvable:$true] %s205
          %211 = dma.hbm_to_vmem [thread:$0]  %s204, 2048, %s206, [#allocation6], 64, 64, 4
        $region16: #{tpu_custom_call.1} parent=11 // pred_fallthru
          _
        // Predicated region
        $region17: #{tpu_custom_call.1} parent=11 // pred_check
          %p212 = pneg %p115
        $region18: #{tpu_custom_call.1} parent=11 // pred_check_branch
          %214 = sbr.rel (%p212) target = $region20
        $region19: #{tpu_custom_call.1} parent=11 // pred_region
          _
        $region20: #{tpu_custom_call.1} parent=11 // pred_fallthru
          _
        // Predicated region
        $region21: #{tpu_custom_call.1} parent=11 // pred_check
          %p215 = pneg %p136
        $region22: #{tpu_custom_call.1} parent=11 // pred_check_branch
          %217 = sbr.rel (%p215) target = $region24
        $region23: #{tpu_custom_call.1} parent=11 // pred_region
          _
        $region24: #{tpu_custom_call.1} parent=11 // pred_fallthru
          _
        // Predicated region
        $region25: #{tpu_custom_call.1} parent=11 // pred_check
          %p218 = pneg %p157
        $region26: #{tpu_custom_call.1} parent=11 // pred_check_branch
          %220 = sbr.rel (%p218) target = $region28
        $region27: #{tpu_custom_call.1} parent=11 // pred_region
          _
        $region28: #{tpu_custom_call.1} parent=11 // pred_fallthru
          _
      $region12: #{tpu_custom_call.1} parent=5 // pred_fallthru
        _
      %p221 = scmp.lt.s32.totalorder %s21, 2
      // Predicated region
      $region29: #{tpu_custom_call.1} parent=5 // pred_check
        %p222 = pneg %p221
      $region30: #{tpu_custom_call.1} parent=5 // pred_check_branch
        %224 = sbr.rel (%p222) target = $region32
      $region31: #{tpu_custom_call.1} parent=5 // pred_region
        // Predicated region
        $region33: #{tpu_custom_call.1} parent=31 // pred_check
          %p225 = pneg %p41
        $region34: #{tpu_custom_call.1} parent=31 // pred_check_branch
          %227 = sbr.rel (%p225) target = $region36
        $region35: #{tpu_custom_call.1} parent=31 // pred_region
          %s228 = sand.u32 %s31, 1
          %s229 = scalar_lea.sflag [#allocation3], %s228
          %s230 = sand.u32 %s31, 1
          %s231 = smul.addr %s230, 8
          %s232 = scalar_lea.vmem [#allocation2], %s231
          %234 = vsyncadd %s229, 0
          %s235 = smul.addr %s21, 2
          %s236 = smul.addr %s235, 4
          %s237 = scalar_lea.hbm %s0, %s236
          %s239 = sshll.u32 %s237, 4
          %s240 = int_to_ptr.hbm [resolvable:$true] %s239
          %s241 = sshll.u32 %s232, 4
          %s242 = int_to_ptr.vmem [resolvable:$true] %s241
          %244 = dma.hbm_to_vmem [thread:$0]  %s240, 128, %s242, %s229
        $region36: #{tpu_custom_call.1} parent=31 // pred_fallthru
          _
        // Predicated region
        $region37: #{tpu_custom_call.1} parent=31 // pred_check
          %p245 = pneg %p67
        $region38: #{tpu_custom_call.1} parent=31 // pred_check_branch
          %247 = sbr.rel (%p245) target = $region40
        $region39: #{tpu_custom_call.1} parent=31 // pred_region
          %s248 = sand.u32 %s21, 1
          %s249 = scalar_lea.sflag [#allocation6], %s248
          %s250 = sand.u32 %s57, 1
          %s251 = smul.addr %s250, 4
          %s252 = scalar_lea.vmem [#allocation5], %s251
          %254 = vsyncadd %s249, 0
          %s255 = smul.addr %s21, 4
          %s256 = scalar_lea.hbm %s1, %s255
          %s258 = sshll.u32 %s256, 4
          %s259 = int_to_ptr.hbm [resolvable:$true] %s258
          %s260 = sshll.u32 %s252, 4
          %s261 = int_to_ptr.vmem [resolvable:$true] %s260
          %263 = dma.hbm_to_vmem [thread:$0]  %s259, 64, %s261, %s249
        $region40: #{tpu_custom_call.1} parent=31 // pred_fallthru
          _
      $region32: #{tpu_custom_call.1} parent=5 // pred_fallthru
        _
      %p264 = scmp.le.s32.totalorder 1, %s21
      %p265 = scmp.lt.s32.totalorder %s21, 3
      %p266 = pnand %p264, %p265
      %p267 = pneg %p266
      // Predicated region
      $region41: #{tpu_custom_call.1} parent=5 // pred_check
        _
      $region42: #{tpu_custom_call.1} parent=5 // pred_check_branch
        %269 = sbr.rel (%p266) target = $region44
      $region43: #{tpu_custom_call.1} parent=5 // pred_region
        %s270 = ssub.s32 %s21, 1
        %s271 = sand.u32 %s34, 1
        %s272 = scalar_lea.sflag [#allocation3], %s271
        %s273 = sand.u32 %s34, 1
        %s274 = smul.addr %s273, 8
        %s275 = scalar_lea.vmem [#allocation2], %s274
        // Predicated region
        $region45: #{tpu_custom_call.1} parent=43 // pred_check
          %p276 = pneg %p47
        $region46: #{tpu_custom_call.1} parent=43 // pred_check_branch
          %278 = sbr.rel (%p276) target = $region48
        $region47: #{tpu_custom_call.1} parent=43 // pred_region
          %280 = dma.done %s272, 128
        $region48: #{tpu_custom_call.1} parent=43 // pred_fallthru
          _
        %s281 = sand.u32 %s26, 1
        %s282 = scalar_lea.sflag [#allocation6], %s281
        %s283 = sand.u32 %s60, 1
        %s284 = smul.addr %s283, 4
        %s285 = scalar_lea.vmem [#allocation5], %s284
        // Predicated region
        $region49: #{tpu_custom_call.1} parent=43 // pred_check
          %p286 = pneg %p73
        $region50: #{tpu_custom_call.1} parent=43 // pred_check_branch
          %288 = sbr.rel (%p286) target = $region52
        $region51: #{tpu_custom_call.1} parent=43 // pred_region
          %290 = dma.done %s282, 64
        $region52: #{tpu_custom_call.1} parent=43 // pred_fallthru
          _
        // Predicated region
        $region53: #{tpu_custom_call.1} parent=43 // pred_check
          %p291 = pneg %p94
        $region54: #{tpu_custom_call.1} parent=43 // pred_check_branch
          %293 = sbr.rel (%p291) target = $region56
        $region55: #{tpu_custom_call.1} parent=43 // pred_region
          %295 = dma.done [#allocation6], 2048
        $region56: #{tpu_custom_call.1} parent=43 // pred_fallthru
          _
        %s296 = sand.u32 %s34, 1
        %s297 = scalar_lea.sflag [#allocation3], %s296
        %s298 = sand.u32 %s34, 1
        %s299 = smul.addr %s298, 8
        %s300 = scalar_lea.vmem [#allocation2], %s299
        %p301 = pneg %p47
        %p302 = pneg %p44
        %s303 = sand.u32 %s26, 1
        %s304 = scalar_lea.sflag [#allocation6], %s303
        %s305 = sand.u32 %s60, 1
        %s306 = smul.addr %s305, 4
        %s307 = scalar_lea.vmem [#allocation5], %s306
        %p308 = pneg %p73
        %p309 = pneg %p70
        %p310 = pneg %p94
        %p311 = pneg %p91
        %p312 = pneg %p115
        %p313 = pneg %p112
        %p314 = pneg %p136
        %p315 = pneg %p133
        %p316 = pneg %p157
        %p317 = pneg %p154
        %p318 = pneg %p183
        %p319 = pneg %p180
        %s320 = sand.u32 %s170, 1
        %s321 = scalar_lea.sflag [#allocation4], %s320
        %s322 = sand.u32 %s170, 1
        %s323 = smul.addr %s322, 4
        %s324 = scalar_lea.vmem [#allocation8], %s323
        %v325 = vld [vmem:[%s3] sm:$0x1]
        %v326 = vld [vmem:[%s4] sm:$0x1]
        %v327 = vld [vmem:[%s5] sm:$0x1]
        %v328 = vld [vmem:[%s275] sm:$0xff]
        %v329 = vld [vmem:[#allocation7] sm:$0xf]
        %v330 = vld [vmem:[#allocation7 + $0x4] sm:$0xf]
        %v331 = vld [vmem:[#allocation7 + $0x8] sm:$0xf]
        %v332 = vld [vmem:[#allocation7 + $0xc] sm:$0xf]
        %v333 = vld [vmem:[#allocation7 + $0x10] sm:$0xf]
        %v334 = vld [vmem:[#allocation7 + $0x14] sm:$0xf]
        %v335 = vld [vmem:[#allocation7 + $0x18] sm:$0xf]
        %v336 = vld [vmem:[#allocation7 + $0x1c] sm:$0xf]
        %v337 = vld [vmem:[#allocation7 + $0x20] sm:$0xf]
        %v338 = vld [vmem:[#allocation7 + $0x24] sm:$0xf]
        %v339 = vld [vmem:[#allocation7 + $0x28] sm:$0xf]
        %v340 = vld [vmem:[#allocation7 + $0x2c] sm:$0xf]
        %v341 = vld [vmem:[#allocation7 + $0x30] sm:$0xf]
        %v342 = vld [vmem:[#allocation7 + $0x34] sm:$0xf]
        %v343 = vld [vmem:[#allocation7 + $0x38] sm:$0xf]
        %v344 = vld [vmem:[#allocation7 + $0x3c] sm:$0xf]
        %v345 = vld [vmem:[#allocation7 + $0x40] sm:$0xf]
        %v346 = vld [vmem:[#allocation7 + $0x44] sm:$0xf]
        %v347 = vld [vmem:[#allocation7 + $0x48] sm:$0xf]
        %v348 = vld [vmem:[#allocation7 + $0x4c] sm:$0xf]
        %v349 = vld [vmem:[#allocation7 + $0x50] sm:$0xf]
        %v350 = vld [vmem:[#allocation7 + $0x54] sm:$0xf]
        %v351 = vld [vmem:[#allocation7 + $0x58] sm:$0xf]
        %v352 = vld [vmem:[#allocation7 + $0x5c] sm:$0xf]
        %v353 = vld [vmem:[#allocation7 + $0x60] sm:$0xf]
        %v354 = vld [vmem:[#allocation7 + $0x64] sm:$0xf]
        %v355 = vld [vmem:[#allocation7 + $0x68] sm:$0xf]
        %v356 = vld [vmem:[#allocation7 + $0x6c] sm:$0xf]
        %v357 = vld [vmem:[#allocation7 + $0x70] sm:$0xf]
        %v358 = vld [vmem:[#allocation7 + $0x74] sm:$0xf]
        %v359 = vld [vmem:[#allocation7 + $0x78] sm:$0xf]
        %v360 = vld [vmem:[#allocation7 + $0x7c] sm:$0xf]
        %v361 = vld [vmem:[%s285] sm:$0xf]
        %v362 = vunpack.c.l.bf16 %v361
        %v364 = vperm.slane %v325, 0
        %v366 = vadd.f32 %v362, %v364
        %v368 = vunpack.c.l.b16 %v328
        %v369 = vunpack.c.h.b16 %v328
        %v370 = vpack.c.b16 %v368, %v368
        %v371 = vpack.c.b16 %v369, %v369
        %v406 = vunpack.c.l.b16 %v329
        %v407 = vunpack.c.l.b16 %v330
        %v408 = vunpack.c.l.b16 %v331
        %v409 = vunpack.c.l.b16 %v332
        %v410 = vunpack.c.l.b16 %v333
        %v411 = vunpack.c.l.b16 %v334
        %v412 = vunpack.c.l.b16 %v335
        %v413 = vunpack.c.l.b16 %v336
        %v414 = vunpack.c.l.b16 %v337
        %v415 = vunpack.c.l.b16 %v338
        %v416 = vunpack.c.l.b16 %v339
        %v417 = vunpack.c.l.b16 %v340
        %v418 = vunpack.c.l.b16 %v341
        %v419 = vunpack.c.l.b16 %v342
        %v420 = vunpack.c.l.b16 %v343
        %v421 = vunpack.c.l.b16 %v344
        %v422 = vunpack.c.l.b16 %v345
        %v423 = vunpack.c.l.b16 %v346
        %v424 = vunpack.c.l.b16 %v347
        %v425 = vunpack.c.l.b16 %v348
        %v426 = vunpack.c.l.b16 %v349
        %v427 = vunpack.c.l.b16 %v350
        %v428 = vunpack.c.l.b16 %v351
        %v429 = vunpack.c.l.b16 %v352
        %v430 = vunpack.c.l.b16 %v353
        %v431 = vunpack.c.l.b16 %v354
        %v432 = vunpack.c.l.b16 %v355
        %v433 = vunpack.c.l.b16 %v356
        %v434 = vunpack.c.l.b16 %v357
        %v435 = vunpack.c.l.b16 %v358
        %v436 = vunpack.c.l.b16 %v359
        %v437 = vunpack.c.l.b16 %v360
        %v438 = vpack.c.b16 %v407, %v406
        %v439 = vpack.c.b16 %v409, %v408
        %v440 = vpack.c.b16 %v411, %v410
        %v441 = vpack.c.b16 %v413, %v412
        %v442 = vpack.c.b16 %v415, %v414
        %v443 = vpack.c.b16 %v417, %v416
        %v444 = vpack.c.b16 %v419, %v418
        %v445 = vpack.c.b16 %v421, %v420
        %v446 = vpack.c.b16 %v423, %v422
        %v447 = vpack.c.b16 %v425, %v424
        %v448 = vpack.c.b16 %v427, %v426
        %v449 = vpack.c.b16 %v429, %v428
        %v450 = vpack.c.b16 %v431, %v430
        %v451 = vpack.c.b16 %v433, %v432
        %v452 = vpack.c.b16 %v435, %v434
        %v453 = vpack.c.b16 %v437, %v436
        %470 = vmatpush.bf16.msra.mxu0 %v445
        %471 = vmatpush.bf16.msra.mxu0 %v444
        %472 = vmatpush.bf16.msra.mxu0 %v443
        %473 = vmatpush.bf16.msra.mxu0 %v442
        %474 = vmatpush.bf16.msra.mxu0 %v441
        %475 = vmatpush.bf16.msra.mxu0 %v440
        %476 = vmatpush.bf16.msra.mxu0 %v439
        %477 = vmatpush.bf16.msra.mxu0 %v438
        %478 = vmatmul.bf16.gmra.mxu0 %v370
        %v479 = vpop.f32.mrf.mxu0
        %v480 = vadd.f32 %v366, %v479
        %v481 = vpop.f32.mrf.mxu0
        %482 = vdwg.mxu0
        %483 = vmatpush.bf16.msra.mxu0 %v453
        %484 = vmatpush.bf16.msra.mxu0 %v452
        %485 = vmatpush.bf16.msra.mxu0 %v451
        %486 = vmatpush.bf16.msra.mxu0 %v450
        %487 = vmatpush.bf16.msra.mxu0 %v449
        %488 = vmatpush.bf16.msra.mxu0 %v448
        %489 = vmatpush.bf16.msra.mxu0 %v447
        %490 = vmatpush.bf16.msra.mxu0 %v446
        %491 = vmatmul.bf16.gmra.mxu0 %v371
        %v492 = vpop.f32.mrf.mxu0
        %v493 = vadd.f32 %v480, %v492
        %v494 = vpop.f32.mrf.mxu0
        %495 = vdwg.mxu0
        %496 = vadd.xlane.f32.xlu0 %v493
        %v497 = vpop.xlane.xlu0 %496
        %v498 = vrcp.pop 128.0
        %v499 = vmul.f32 128.0, %v498
        %v500 = vsub.f32 1.0, %v499
        %v501 = vmul.f32 %v498, %v500
        %v502 = vadd.f32 %v498, %v501
        %vm503 = vweird.f32 %v498
        %v504 = vsel %vm503, %v498, %v502
        %v505 = vmul.f32 %v497, %v504
        %v506 = vsub.f32 %v493, %v505
        %v507 = vmul.f32 %v506, %v506
        %508 = vadd.xlane.f32.xlu0 %v507
        %v509 = vpop.xlane.xlu0 %508
        %v510 = vmul.f32 %v509, %v504
        %v511 = vadd.f32 %v510, 1e-12
        %v512 = vrsqrt.pop %v511
        %v513 = vmul.f32 %v512, %v511
        %v514 = vmul.f32 %v513, %v512
        %v515 = vmul.f32 0.5, %v514
        %v516 = vsub.f32 1.5, %v515
        %v517 = vmul.f32 %v512, %v516
        %vm518 = vweird.f32 %v511
        %vm519 = vweird.f32 %v512
        %vm520 = vmor %vm518, %vm519
        %v521 = vsel %vm520, %v512, %v517
        %v522 = vmul.f32 %v506, %v521
        %v524 = vperm.slane %v326, 0
        %v526 = vmul.f32 %v522, %v524
        %v528 = vperm.slane %v327, 0
        %v530 = vadd.f32 %v526, %v528
        %v531 = vpack.c.bf16 %v530, %v530
        %532 = vst [vmem:[%s324] sm:$0xf] %v531
        %s533 = sand.u32 %s170, 1
        %s534 = scalar_lea.sflag [#allocation4], %s533
        %s535 = sand.u32 %s170, 1
        %s536 = smul.addr %s535, 4
        %s537 = scalar_lea.vmem [#allocation8], %s536
        // Predicated region
        $region57: #{tpu_custom_call.1} parent=43 // pred_check
          %p538 = pneg %p180
        $region58: #{tpu_custom_call.1} parent=43 // pred_check_branch
          %540 = sbr.rel (%p538) target = $region60
        $region59: #{tpu_custom_call.1} parent=43 // pred_region
          %542 = vsyncadd %s534, 0
          %s543 = smul.addr %s26, 4
          %s544 = scalar_lea.hbm %s6, %s543
          %s546 = sshll.u32 %s537, 4
          %s547 = int_to_ptr.vmem [resolvable:$true] %s546
          %s548 = sshll.u32 %s544, 4
          %s549 = int_to_ptr.hbm [resolvable:$true] %s548
          %551 = dma.vmem_to_hbm [thread:$0]  %s547, 64, %s549, %s534
        $region60: #{tpu_custom_call.1} parent=43 // pred_fallthru
          _
      $region44: #{tpu_custom_call.1} parent=5 // pred_fallthru
        _
      %p552 = scmp.le.s32.totalorder 2, %s21
      // Predicated region
      $region61: #{tpu_custom_call.1} parent=5 // pred_check
        %p553 = pneg %p552
      $region62: #{tpu_custom_call.1} parent=5 // pred_check_branch
        %555 = sbr.rel (%p553) target = $region64
      $region63: #{tpu_custom_call.1} parent=5 // pred_region
        %s556 = ssub.s32 %s21, 2
        // Predicated region
        $region65: #{tpu_custom_call.1} parent=63 // pred_check
          %p557 = pneg %p186
        $region66: #{tpu_custom_call.1} parent=63 // pred_check_branch
          %559 = sbr.rel (%p557) target = $region68
        $region67: #{tpu_custom_call.1} parent=63 // pred_region
          %s560 = sand.u32 %s171, 1
          %s561 = scalar_lea.sflag [#allocation4], %s560
          %s562 = sand.u32 %s171, 1
          %s563 = smul.addr %s562, 4
          %s564 = scalar_lea.vmem [#allocation8], %s563
          %566 = dma.done %s561, 64
        $region68: #{tpu_custom_call.1} parent=63 // pred_fallthru
          _
      $region64: #{tpu_custom_call.1} parent=5 // pred_fallthru
        _
    $region6: #{tpu_custom_call.1} parent=1 // loop_footer
      %s25 = sadd.s32 1, %s21
    $region7: #{tpu_custom_call.1} parent=1 // loop_footer_branch
      %20 = sbr.rel target = $region3
    $region8: #{tpu_custom_call.1} parent=1 // loop_exit
      _
    %567 = vsyncpa [#allocation3], 1
    %s568 = scalar_lea.sflag [#allocation3], 1
    %569 = vsyncpa %s568, 1
    %570 = vsyncpa [#allocation6], 1
    %s571 = scalar_lea.sflag [#allocation6], 1
    %572 = vsyncpa %s571, 1
    %573 = vsyncpa [#allocation4], 1
    %s574 = scalar_lea.sflag [#allocation4], 1
    %575 = vsyncpa %s574, 1

</llo_original>
